<compile_context>
chip_gen: v7x
topology: tpu7x:2x2x1
jax: 0.10.0
libtpu: 0.0.40
codegen_flags: <defaults>
</compile_context>

<pallas_src>
import jax
import jax.numpy as jnp
from jax.experimental import pallas as pl
from jax.experimental.pallas import tpu as pltpu  # noqa: F401  (TPU backend)

NEGATIVE_SLOPE = 0.45


def _fused_kernel(x_ref, wb_ref, o_ref):
    # x_ref : (Cin=2, M)        lane-major activations
    # wb_ref: (K4=12, Cin+1=3)  columns 0..Cin-1 = weights, column Cin = bias
    # o_ref : (K4, M)
    x0 = x_ref[0:1, :]                    # (1, M)
    x1 = x_ref[1:2, :]                    # (1, M)
    w0 = wb_ref[:, 0:1]                   # (K4, 1)
    w1 = wb_ref[:, 1:2]                   # (K4, 1)
    b = wb_ref[:, 2:3]                    # (K4, 1)
    # K=2 contraction as two broadcast FMAs; bias folded into the accumulator init.
    y = b + w0 * x0 + w1 * x1             # (K4, M) f32
    # leaky_relu(slope) with 0 < slope < 1  ==  max(y, slope*y)  (2 VALU ops vs 3).
    y = jnp.maximum(y, y * NEGATIVE_SLOPE)
    # NOTE: jnp.sin lowers to range-reduction + polynomial on the VPU (not EUP).
    y = jnp.sin(y - 0.5)
    o_ref[...] = (y * NEGATIVE_SLOPE).astype(o_ref.dtype)


@jax.jit
def conv_transpose_fused(x_nchw, weight, bias):
    """x_nchw: (N, Cin, H, W); weight: (Cin, Cout, KH, KW); bias: (Cout,)."""
    N, Cin, H, W = x_nchw.shape
    _, Cout, KH, KW = weight.shape
    M = N * H * W
    K4 = Cout * KH * KW

    # (N, Cin, H, W) -> (Cin, N*H*W); no pad needed, full-array block handles M=144.
    x_t = jnp.transpose(x_nchw, (1, 0, 2, 3)).reshape(Cin, M)

    # Pack weight + bias into a single VMEM input: (K4, Cin+1).
    w_t = weight.reshape(Cin, K4).T                       # (K4, Cin)
    b_col = jnp.repeat(bias, KH * KW)[:, None]            # (K4, 1)
    wb = jnp.concatenate([w_t, b_col], axis=1)            # (K4, Cin+1)

    # Advisory cost; sin counted as plain VPU flops (no EUP transcendentals here).
    cost = pl.CostEstimate(
        flops=int(20 * K4 * M),
        transcendentals=0,
        bytes_accessed=int(4 * (Cin * M + K4 * (Cin + 1) + K4 * M)),
    )

    y_t = pl.pallas_call(
        _fused_kernel,
        out_shape=jax.ShapeDtypeStruct((K4, M), jnp.float32),
        in_specs=[
            pl.BlockSpec((Cin, M), lambda: (0, 0)),
            pl.BlockSpec((K4, Cin + 1), lambda: (0, 0)),
        ],
        out_specs=pl.BlockSpec((K4, M), lambda: (0, 0)),
        cost_estimate=cost,
    )(x_t, wb)
    # Footprint ~20 KB total: no grid / vmem_limit needed on v5e/v6e/v7x.
    # TODO(synk): if M ever scales up, add a 1-D grid over M (block (K4, 512-2048),
    # dimension_semantics=("parallel",)) so both v7x TensorCores get work.

    # Scatter back to NCHW: (K4, M) -> (Cout, KH, KW, N, H, W) -> (N, Cout, 2H, 2W).
    # Kept only for PyTorch-semantics parity; a consumer that can take the
    # lane-dense (K4, M) slab should skip this transpose.
    y = y_t.reshape(Cout, KH, KW, N, H, W)
    y = jnp.transpose(y, (3, 0, 4, 1, 5, 2)).reshape(N, Cout, H * KH, W * KW)
    return y


def _reference(x_nchw, weight, bias):
    """Pure-jnp reference of the PyTorch module (stride == kernel, no padding)."""
    N, Cin, H, W = x_nchw.shape
    _, Cout, KH, KW = weight.shape
    t = jnp.einsum("nchw,cokl->nohkwl", x_nchw, weight)
    t = t.reshape(N, Cout, H * KH, W * KW) + bias[None, :, None, None]
    t = jnp.where(t > 0, t, t * NEGATIVE_SLOPE)
    return jnp.sin(t - 0.5) * NEGATIVE_SLOPE


if __name__ == "__main__":
    key = jax.random.PRNGKey(0)
    k_x, k_w, k_b = jax.random.split(key, 3)

    # Input matches the PyTorch script: torch.randn(16, 2, 3, 3)
    x = jax.random.normal(k_x, (16, 2, 3, 3), dtype=jnp.float32)

    # ConvTranspose2d(2, 3, 2, stride=2) parameter shapes:
    # weight (Cin, Cout, KH, KW) = (2, 3, 2, 2), bias (Cout,) = (3,)
    fan_in = 2 * 2 * 2
    bound = float(fan_in) ** -0.5
    weight = jax.random.uniform(k_w, (2, 3, 2, 2), minval=-bound, maxval=bound,
                                dtype=jnp.float32)
    bias = jax.random.uniform(k_b, (3,), minval=-bound, maxval=bound,
                              dtype=jnp.float32)

    out = conv_transpose_fused(x, weight, bias)
    jax.block_until_ready(out)
    assert out.shape == (16, 3, 6, 6), out.shape

    ref = _reference(x, weight, bias)
    err = float(jnp.max(jnp.abs(out - ref)))
    assert err < 1e-3, err

    print("KERNEL_OK")
</pallas_src>

<mosaic_0001>
module attributes {stable_mosaic.version = 11 : i64} {
  func.func @_fused_kernel(%arg0: memref<2x144xf32, #tpu.memory_space<vmem>>, %arg1: memref<12x3xf32, #tpu.memory_space<vmem>>, %arg2: memref<12x144xf32, #tpu.memory_space<vmem>>) attributes {dimension_semantics = [], scalar_prefetch = 0 : i64, scratch_operands = 0 : i64, tpu.core_type = #tpu.core_type<tc>} {
    %c0 = arith.constant 0 : index
    %c0_0 = arith.constant 0 : index
    %0 = vector.load %arg0[%c0, %c0_0] : memref<2x144xf32, #tpu.memory_space<vmem>>, vector<1x144xf32>
    %c1 = arith.constant 1 : index
    %c0_1 = arith.constant 0 : index
    %1 = vector.load %arg0[%c1, %c0_1] : memref<2x144xf32, #tpu.memory_space<vmem>>, vector<1x144xf32>
    %c0_2 = arith.constant 0 : index
    %c0_3 = arith.constant 0 : index
    %2 = vector.load %arg1[%c0_2, %c0_3] : memref<12x3xf32, #tpu.memory_space<vmem>>, vector<12x1xf32>
    %c0_4 = arith.constant 0 : index
    %c1_5 = arith.constant 1 : index
    %3 = vector.load %arg1[%c0_4, %c1_5] : memref<12x3xf32, #tpu.memory_space<vmem>>, vector<12x1xf32>
    %c0_6 = arith.constant 0 : index
    %c2 = arith.constant 2 : index
    %4 = vector.load %arg1[%c0_6, %c2] : memref<12x3xf32, #tpu.memory_space<vmem>>, vector<12x1xf32>
    %5 = vector.broadcast %2 : vector<12x1xf32> to vector<12x144xf32>
    %6 = vector.broadcast %0 : vector<1x144xf32> to vector<12x144xf32>
    %7 = arith.mulf %5, %6 : vector<12x144xf32>
    %8 = vector.broadcast %4 : vector<12x1xf32> to vector<12x144xf32>
    %9 = arith.addf %8, %7 : vector<12x144xf32>
    %10 = vector.broadcast %3 : vector<12x1xf32> to vector<12x144xf32>
    %11 = vector.broadcast %1 : vector<1x144xf32> to vector<12x144xf32>
    %12 = arith.mulf %10, %11 : vector<12x144xf32>
    %13 = arith.addf %9, %12 : vector<12x144xf32>
    %cst = arith.constant 4.500000e-01 : f32
    %14 = vector.broadcast %cst : f32 to vector<12x144xf32>
    %15 = arith.mulf %13, %14 : vector<12x144xf32>
    %16 = arith.maximumf %13, %15 : vector<12x144xf32>
    %cst_7 = arith.constant 5.000000e-01 : f32
    %17 = vector.broadcast %cst_7 : f32 to vector<12x144xf32>
    %18 = arith.subf %16, %17 : vector<12x144xf32>
    %19 = math.sin %18 : vector<12x144xf32>
    %cst_8 = arith.constant 4.500000e-01 : f32
    %20 = vector.broadcast %cst_8 : f32 to vector<12x144xf32>
    %21 = arith.mulf %19, %20 : vector<12x144xf32>
    %c0_9 = arith.constant 0 : index
    %c0_10 = arith.constant 0 : index
    %22 = vector.load %arg2[%c0_9, %c0_10] : memref<12x144xf32, #tpu.memory_space<vmem>>, vector<12x144xf32>
    tpu.vector_store %arg2[%c0_9, %c0_10], %21 {strides = array<i32>} : memref<12x144xf32, #tpu.memory_space<vmem>>, vector<12x144xf32>,
    return
  }
}

</mosaic_0001>

<llo_original>
// kernel: conv_transpose_fused.1
$region0: #{conv_transpose_fused.1}
  #allocation0 [shape = 'u32[]', space=smem, size = 0x4, offset = 0x4, fixed_abs, tag = 'smem constant byte address 0x4 - core index']
  #allocation1 [shape = 'u32[144,128]{1,0:T(1,128)}', space=vmem, size = 0x12000, scoped, tag = 'internal scratch']
  %s0 = inlined_call_operand.vmem [shape: f32[2,144], index: 0, kind: input, shape index: {}]
  %s1 = inlined_call_operand.vmem [shape: f32[12,3], index: 1, kind: input, shape index: {}]
  %s2 = inlined_call_operand.vmem [shape: f32[12,144], index: 2, kind: output, shape index: {}]
  %s3 = sld [smem:[#allocation0]]
  $region18: #{conv_transpose_fused.1} parent=0
    _
  %s5 = ssub.s32 1, %s3
  %s6 = scalar_select 0, %s5, %s3
  // Predicated region
  $region2: #{conv_transpose_fused.1} parent=0 // pred_check
    _
  $region3: #{conv_transpose_fused.1} parent=0 // pred_check_branch
    %8 = sbr.rel (0) target = $region5
  $region4: #{conv_transpose_fused.1} parent=0 // pred_region
    _
  $region5: #{conv_transpose_fused.1} parent=0 // pred_fallthru
    _
  // Predicated region
  $region6: #{conv_transpose_fused.1} parent=0 // pred_check
    _
  $region7: #{conv_transpose_fused.1} parent=0 // pred_check_branch
    %10 = sbr.rel (0) target = $region9
  $region8: #{conv_transpose_fused.1} parent=0 // pred_region
    _
  $region9: #{conv_transpose_fused.1} parent=0 // pred_fallthru
    _
  %v11 = vld [vmem:[%s0] ss:$2 sm:$0x3]
  %s12 = scalar_lea.vmem %s0, 1
  %v13 = vld [vmem:[%s12] ss:$2 sm:$0x3]
  %v14 = vld [vmem:[%s1] sm:$0xff]
  %v15 = vld [vmem:[%s1 + $0x8] sm:$0xf]
  %17 = vset.pattern.permute.xlu0 0
  %18 = vperm.xlu0 %17, %v14
  %v19 = vpop.permute.xlu0 %18
  %22 = vset.pattern.permute.xlu0 0
  %23 = vperm.xlu0 %22, %v15
  %v24 = vpop.permute.xlu0 %23
  %v27 = vlaneseq
  %v28 = vshrl.u32 %v27, 7
  %v29 = vsub.s32 0, %v28
  %v30 = vrot.slane %v11, %v29
  %v31 = vlaneseq
  %v32 = vshrl.u32 %v31, 7
  %v33 = vsub.s32 1, %v32
  %v34 = vrot.slane %v11, %v33
  %v37 = vmul.f32 %v19, %v30
  %v38 = vmul.f32 %v19, %v34
  %v39 = vmul.f32 %v24, %v30
  %v40 = vmul.f32 %v24, %v34
  %41 = vset.pattern.permute.xlu0 2
  %42 = vperm.xlu0 %41, %v14
  %v43 = vpop.permute.xlu0 %42
  %45 = vset.pattern.permute.xlu0 2
  %46 = vperm.xlu0 %45, %v15
  %v47 = vpop.permute.xlu0 %46
  %v49 = vadd.f32 %v43, %v37
  %v50 = vadd.f32 %v43, %v38
  %v51 = vadd.f32 %v47, %v39
  %v52 = vadd.f32 %v47, %v40
  %53 = vset.pattern.permute.xlu0 1
  %54 = vperm.xlu0 %53, %v14
  %v55 = vpop.permute.xlu0 %54
  %57 = vset.pattern.permute.xlu0 1
  %58 = vperm.xlu0 %57, %v15
  %v59 = vpop.permute.xlu0 %58
  %v62 = vlaneseq
  %v63 = vshrl.u32 %v62, 7
  %v64 = vsub.s32 0, %v63
  %v65 = vrot.slane %v13, %v64
  %v66 = vlaneseq
  %v67 = vshrl.u32 %v66, 7
  %v68 = vsub.s32 1, %v67
  %v69 = vrot.slane %v13, %v68
  %v72 = vmul.f32 %v55, %v65
  %v73 = vmul.f32 %v55, %v69
  %v74 = vmul.f32 %v59, %v65
  %v75 = vmul.f32 %v59, %v69
  %v76 = vadd.f32 %v49, %v72
  %v77 = vadd.f32 %v50, %v73
  %v78 = vadd.f32 %v51, %v74
  %v79 = vadd.f32 %v52, %v75
  %v80 = vmul.f32 %v76, 0.45
  %v81 = vmul.f32 %v77, 0.45
  %v82 = vmul.f32 %v78, 0.45
  %v83 = vmul.f32 %v79, 0.45
  %v84 = vmax.f32 %v76, %v80
  %v85 = vmax.f32 %v77, %v81
  %v86 = vmax.f32 %v78, %v82
  %v87 = vmax.f32 %v79, %v83
  %v88 = vsub.f32 %v84, 0.5
  %v89 = vsub.f32 %v85, 0.5
  %v90 = vsub.f32 %v86, 0.5
  %v91 = vsub.f32 %v87, 0.5
  %v92 = vand.u32 2147483647, %v88
  %vm93 = vcmp.le.f32.partialorder %v92, 0.7853982
  %vm94 = vcmp.lt.s32.totalorder %v88, 0
  %v95 = vand.u32 %v88, 2139095040
  %v96 = vshrl.u32 %v95, 23
  %v97 = vsub.s32 %v96, 127
  %v98 = vand.u32 2147483647, %v88
  %v99 = vand.u32 %v98, 8388607
  %v100 = vor.u32 %v99, 8388608
  %v101 = vsub.s32 0, %v100
  %v102 = vadd.s32 %v97, 1
  %vm103 = vcmp.gt.s32.totalorder %v102, 0
  %v104 = vsel %vm103, %v102, 0
  %v105 = vshrl.u32 %v104, 5
  %v106 = vand.u32 %v104, 31
  %v107 = vsub.s32 32, %v106
  %v108 = vshrl.u32 683565275, %v107
  %v109 = vshll.u32 683565275, %v106
  %v110 = vshrl.u32 2475754826, %v107
  %v111 = vor.u32 %v109, %v110
  %v112 = vshll.u32 2475754826, %v106
  %v113 = vshrl.u32 2131351028, %v107
  %v114 = vor.u32 %v112, %v113
  %v115 = vshll.u32 2131351028, %v106
  %v116 = vshrl.u32 2102212464, %v107
  %v117 = vor.u32 %v115, %v116
  %v118 = vshll.u32 2102212464, %v106
  %v119 = vshrl.u32 920167782, %v107
  %v120 = vor.u32 %v118, %v119
  %v121 = vshll.u32 920167782, %v106
  %v122 = vshrl.u32 1326507024, %v107
  %v123 = vor.u32 %v121, %v122
  %vm124 = vcmp.lt.s32.totalorder %v105, 1
  %vm125 = vcmp.lt.s32.totalorder %v105, 2
  %vm126 = vcmp.lt.s32.totalorder %v105, 3
  %vm127 = vcmp.lt.s32.totalorder %v105, 4
  %v128 = vsel %vm124, %v108, %v111
  %v129 = vsel %vm127, %v117, 2102212464
  %v130 = vsel %vm126, %v114, %v129
  %v131 = vsel %vm125, %v128, %v130
  %v132 = vsel %vm124, %v111, %v114
  %v133 = vsel %vm127, %v120, 920167782
  %v134 = vsel %vm126, %v117, %v133
  %v135 = vsel %vm125, %v132, %v134
  %v136 = vsel %vm124, %v114, %v117
  %v137 = vsel %vm127, %v123, 1326507024
  %v138 = vsel %vm126, %v120, %v137
  %v139 = vsel %vm125, %v136, %v138
  %v140 = vshll.u32 %v100, 8
  %v141 = vmul.u32.u64.compose %v140, %v139
  %v142 = vextract.low.u32 %v141
  %v143 = vextract.high.u32 %v141
  %v144 = vmul.u32.u64.compose %v140, %v135
  %v145 = vextract.low.u32 %v144
  %v146 = vextract.high.u32 %v144
  %v147 = vmul.u32 %v140, %v131
  %v148 = vadd.s32 %v143, %v145
  %vm149 = vc.u32 %v143, %v145
  %v150 = vadd.s32 %v146, 1
  %v151 = vsel %vm149, %v150, %v146
  %v152 = vadd.s32 %v147, %v151
  %v153 = vadd.s32 %v152, 536870912
  %v154 = vshrl.u32 %v153, 30
  %v155 = vshll.u32 %v154, 30
  %v156 = vsub.s32 %v152, %v155
  %vm157 = vcmp.lt.s32.totalorder %v156, 0
  %v158 = vsub.s32 0, %v156
  %v159 = vsel %vm157, %v158, %v156
  %v160 = vclz %v159
  %v161 = vsub.s32 %v160, 2
  %vm162 = vcmp.gt.s32.totalorder 0, %v161
  %v163 = vsel %vm162, 0, %v161
  %v164 = vsub.s32 32, %v163
  %v165 = vshll.u32 %v156, %v163
  %v166 = vshrl.u32 %v148, %v164
  %v167 = vor.u32 %v165, %v166
  %v168 = vsub.s32 4294967266, %v163
  %v169 = vadd.s32 %v168, 127
  %v170 = vshll.u32 %v169, 23
  %v171 = vor.u32 4788187, %v170
  %v172 = vand.u32 2147483647, %v171
  %v174 = vcvt.s32.f32 %v167
  %v175 = vmul.f32 %v174, %v172
  %v176 = vxor.u32 %v175, 2147483648
  %v177 = vsel %vm94, %v176, %v175
  %v178 = vsub.s32 4, %v154
  %v179 = vsel %vm94, %v178, %v154
  %v180 = vsel %vm93, %v88, %v177
  %v181 = vsel %vm93, 0, %v179
  %v182 = vcosq.f32.pop %v180
  %v183 = vsinq.f32.pop %v180
  %vm184 = vweird.f32 %v88
  %v185 = vadd.s32 %v181, 3
  %v186 = vand.u32 %v185, 3
  %vm187 = vcmp.lt.s32.totalorder %v186, 2
  %vm188 = vcmp.eq.s32.totalorder %v186, 0
  %v189 = vxor.u32 %v183, 2147483648
  %v190 = vsel %vm188, %v182, %v189
  %vm191 = vcmp.eq.s32.totalorder %v186, 2
  %v192 = vxor.u32 %v182, 2147483648
  %v193 = vsel %vm191, %v192, %v183
  %v194 = vsel %vm187, %v190, %v193
  %v195 = vsel %vm184, nan, %v194
  %v196 = vand.u32 2147483647, %v89
  %vm197 = vcmp.le.f32.partialorder %v196, 0.7853982
  %vm198 = vcmp.lt.s32.totalorder %v89, 0
  %v199 = vand.u32 %v89, 2139095040
  %v200 = vshrl.u32 %v199, 23
  %v201 = vsub.s32 %v200, 127
  %v202 = vand.u32 2147483647, %v89
  %v203 = vand.u32 %v202, 8388607
  %v204 = vor.u32 %v203, 8388608
  %v205 = vsub.s32 0, %v204
  %v206 = vadd.s32 %v201, 1
  %vm207 = vcmp.gt.s32.totalorder %v206, 0
  %v208 = vsel %vm207, %v206, 0
  %v209 = vshrl.u32 %v208, 5
  %v210 = vand.u32 %v208, 31
  %v211 = vsub.s32 32, %v210
  %v212 = vshrl.u32 683565275, %v211
  %v213 = vshll.u32 683565275, %v210
  %v214 = vshrl.u32 2475754826, %v211
  %v215 = vor.u32 %v213, %v214
  %v216 = vshll.u32 2475754826, %v210
  %v217 = vshrl.u32 2131351028, %v211
  %v218 = vor.u32 %v216, %v217
  %v219 = vshll.u32 2131351028, %v210
  %v220 = vshrl.u32 2102212464, %v211
  %v221 = vor.u32 %v219, %v220
  %v222 = vshll.u32 2102212464, %v210
  %v223 = vshrl.u32 920167782, %v211
  %v224 = vor.u32 %v222, %v223
  %v225 = vshll.u32 920167782, %v210
  %v226 = vshrl.u32 1326507024, %v211
  %v227 = vor.u32 %v225, %v226
  %vm228 = vcmp.lt.s32.totalorder %v209, 1
  %vm229 = vcmp.lt.s32.totalorder %v209, 2
  %vm230 = vcmp.lt.s32.totalorder %v209, 3
  %vm231 = vcmp.lt.s32.totalorder %v209, 4
  %v232 = vsel %vm228, %v212, %v215
  %v233 = vsel %vm231, %v221, 2102212464
  %v234 = vsel %vm230, %v218, %v233
  %v235 = vsel %vm229, %v232, %v234
  %v236 = vsel %vm228, %v215, %v218
  %v237 = vsel %vm231, %v224, 920167782
  %v238 = vsel %vm230, %v221, %v237
  %v239 = vsel %vm229, %v236, %v238
  %v240 = vsel %vm228, %v218, %v221
  %v241 = vsel %vm231, %v227, 1326507024
  %v242 = vsel %vm230, %v224, %v241
  %v243 = vsel %vm229, %v240, %v242
  %v244 = vshll.u32 %v204, 8
  %v245 = vmul.u32.u64.compose %v244, %v243
  %v246 = vextract.low.u32 %v245
  %v247 = vextract.high.u32 %v245
  %v248 = vmul.u32.u64.compose %v244, %v239
  %v249 = vextract.low.u32 %v248
  %v250 = vextract.high.u32 %v248
  %v251 = vmul.u32 %v244, %v235
  %v252 = vadd.s32 %v247, %v249
  %vm253 = vc.u32 %v247, %v249
  %v254 = vadd.s32 %v250, 1
  %v255 = vsel %vm253, %v254, %v250
  %v256 = vadd.s32 %v251, %v255
  %v257 = vadd.s32 %v256, 536870912
  %v258 = vshrl.u32 %v257, 30
  %v259 = vshll.u32 %v258, 30
  %v260 = vsub.s32 %v256, %v259
  %vm261 = vcmp.lt.s32.totalorder %v260, 0
  %v262 = vsub.s32 0, %v260
  %v263 = vsel %vm261, %v262, %v260
  %v264 = vclz %v263
  %v265 = vsub.s32 %v264, 2
  %vm266 = vcmp.gt.s32.totalorder 0, %v265
  %v267 = vsel %vm266, 0, %v265
  %v268 = vsub.s32 32, %v267
  %v269 = vshll.u32 %v260, %v267
  %v270 = vshrl.u32 %v252, %v268
  %v271 = vor.u32 %v269, %v270
  %v272 = vsub.s32 4294967266, %v267
  %v273 = vadd.s32 %v272, 127
  %v274 = vshll.u32 %v273, 23
  %v275 = vor.u32 4788187, %v274
  %v276 = vand.u32 2147483647, %v275
  %v278 = vcvt.s32.f32 %v271
  %v279 = vmul.f32 %v278, %v276
  %v280 = vxor.u32 %v279, 2147483648
  %v281 = vsel %vm198, %v280, %v279
  %v282 = vsub.s32 4, %v258
  %v283 = vsel %vm198, %v282, %v258
  %v284 = vsel %vm197, %v89, %v281
  %v285 = vsel %vm197, 0, %v283
  %v286 = vcosq.f32.pop %v284
  %v287 = vsinq.f32.pop %v284
  %vm288 = vweird.f32 %v89
  %v289 = vadd.s32 %v285, 3
  %v290 = vand.u32 %v289, 3
  %vm291 = vcmp.lt.s32.totalorder %v290, 2
  %vm292 = vcmp.eq.s32.totalorder %v290, 0
  %v293 = vxor.u32 %v287, 2147483648
  %v294 = vsel %vm292, %v286, %v293
  %vm295 = vcmp.eq.s32.totalorder %v290, 2
  %v296 = vxor.u32 %v286, 2147483648
  %v297 = vsel %vm295, %v296, %v287
  %v298 = vsel %vm291, %v294, %v297
  %v299 = vsel %vm288, nan, %v298
  %v300 = vand.u32 2147483647, %v90
  %vm301 = vcmp.le.f32.partialorder %v300, 0.7853982
  %vm302 = vcmp.lt.s32.totalorder %v90, 0
  %v303 = vand.u32 %v90, 2139095040
  %v304 = vshrl.u32 %v303, 23
  %v305 = vsub.s32 %v304, 127
  %v306 = vand.u32 2147483647, %v90
  %v307 = vand.u32 %v306, 8388607
  %v308 = vor.u32 %v307, 8388608
  %v309 = vsub.s32 0, %v308
  %v310 = vadd.s32 %v305, 1
  %vm311 = vcmp.gt.s32.totalorder %v310, 0
  %v312 = vsel %vm311, %v310, 0
  %v313 = vshrl.u32 %v312, 5
  %v314 = vand.u32 %v312, 31
  %v315 = vsub.s32 32, %v314
  %v316 = vshrl.u32 683565275, %v315
  %v317 = vshll.u32 683565275, %v314
  %v318 = vshrl.u32 2475754826, %v315
  %v319 = vor.u32 %v317, %v318
  %v320 = vshll.u32 2475754826, %v314
  %v321 = vshrl.u32 2131351028, %v315
  %v322 = vor.u32 %v320, %v321
  %v323 = vshll.u32 2131351028, %v314
  %v324 = vshrl.u32 2102212464, %v315
  %v325 = vor.u32 %v323, %v324
  %v326 = vshll.u32 2102212464, %v314
  %v327 = vshrl.u32 920167782, %v315
  %v328 = vor.u32 %v326, %v327
  %v329 = vshll.u32 920167782, %v314
  %v330 = vshrl.u32 1326507024, %v315
  %v331 = vor.u32 %v329, %v330
  %vm332 = vcmp.lt.s32.totalorder %v313, 1
  %vm333 = vcmp.lt.s32.totalorder %v313, 2
  %vm334 = vcmp.lt.s32.totalorder %v313, 3
  %vm335 = vcmp.lt.s32.totalorder %v313, 4
  %v336 = vsel %vm332, %v316, %v319
  %v337 = vsel %vm335, %v325, 2102212464
  %v338 = vsel %vm334, %v322, %v337
  %v339 = vsel %vm333, %v336, %v338
  %v340 = vsel %vm332, %v319, %v322
  %v341 = vsel %vm335, %v328, 920167782
  %v342 = vsel %vm334, %v325, %v341
  %v343 = vsel %vm333, %v340, %v342
  %v344 = vsel %vm332, %v322, %v325
  %v345 = vsel %vm335, %v331, 1326507024
  %v346 = vsel %vm334, %v328, %v345
  %v347 = vsel %vm333, %v344, %v346
  %v348 = vshll.u32 %v308, 8
  %v349 = vmul.u32.u64.compose %v348, %v347
  %v350 = vextract.low.u32 %v349
  %v351 = vextract.high.u32 %v349
  %v352 = vmul.u32.u64.compose %v348, %v343
  %v353 = vextract.low.u32 %v352
  %v354 = vextract.high.u32 %v352
  %v355 = vmul.u32 %v348, %v339
  %v356 = vadd.s32 %v351, %v353
  %vm357 = vc.u32 %v351, %v353
  %v358 = vadd.s32 %v354, 1
  %v359 = vsel %vm357, %v358, %v354
  %v360 = vadd.s32 %v355, %v359
  %v361 = vadd.s32 %v360, 536870912
  %v362 = vshrl.u32 %v361, 30
  %v363 = vshll.u32 %v362, 30
  %v364 = vsub.s32 %v360, %v363
  %vm365 = vcmp.lt.s32.totalorder %v364, 0
  %v366 = vsub.s32 0, %v364
  %v367 = vsel %vm365, %v366, %v364
  %v368 = vclz %v367
  %v369 = vsub.s32 %v368, 2
  %vm370 = vcmp.gt.s32.totalorder 0, %v369
  %v371 = vsel %vm370, 0, %v369
  %v372 = vsub.s32 32, %v371
  %v373 = vshll.u32 %v364, %v371
  %v374 = vshrl.u32 %v356, %v372
  %v375 = vor.u32 %v373, %v374
  %v376 = vsub.s32 4294967266, %v371
  %v377 = vadd.s32 %v376, 127
  %v378 = vshll.u32 %v377, 23
  %v379 = vor.u32 4788187, %v378
  %v380 = vand.u32 2147483647, %v379
  %v382 = vcvt.s32.f32 %v375
  %v383 = vmul.f32 %v382, %v380
  %v384 = vxor.u32 %v383, 2147483648
  %v385 = vsel %vm302, %v384, %v383
  %v386 = vsub.s32 4, %v362
  %v387 = vsel %vm302, %v386, %v362
  %v388 = vsel %vm301, %v90, %v385
  %v389 = vsel %vm301, 0, %v387
  %v390 = vcosq.f32.pop %v388
  %v391 = vsinq.f32.pop %v388
  %vm392 = vweird.f32 %v90
  %v393 = vadd.s32 %v389, 3
  %v394 = vand.u32 %v393, 3
  %vm395 = vcmp.lt.s32.totalorder %v394, 2
  %vm396 = vcmp.eq.s32.totalorder %v394, 0
  %v397 = vxor.u32 %v391, 2147483648
  %v398 = vsel %vm396, %v390, %v397
  %vm399 = vcmp.eq.s32.totalorder %v394, 2
  %v400 = vxor.u32 %v390, 2147483648
  %v401 = vsel %vm399, %v400, %v391
  %v402 = vsel %vm395, %v398, %v401
  %v403 = vsel %vm392, nan, %v402
  %v404 = vand.u32 2147483647, %v91
  %vm405 = vcmp.le.f32.partialorder %v404, 0.7853982
  %vm406 = vcmp.lt.s32.totalorder %v91, 0
  %v407 = vand.u32 %v91, 2139095040
  %v408 = vshrl.u32 %v407, 23
  %v409 = vsub.s32 %v408, 127
  %v410 = vand.u32 2147483647, %v91
  %v411 = vand.u32 %v410, 8388607
  %v412 = vor.u32 %v411, 8388608
  %v413 = vsub.s32 0, %v412
  %v414 = vadd.s32 %v409, 1
  %vm415 = vcmp.gt.s32.totalorder %v414, 0
  %v416 = vsel %vm415, %v414, 0
  %v417 = vshrl.u32 %v416, 5
  %v418 = vand.u32 %v416, 31
  %v419 = vsub.s32 32, %v418
  %v420 = vshrl.u32 683565275, %v419
  %v421 = vshll.u32 683565275, %v418
  %v422 = vshrl.u32 2475754826, %v419
  %v423 = vor.u32 %v421, %v422
  %v424 = vshll.u32 2475754826, %v418
  %v425 = vshrl.u32 2131351028, %v419
  %v426 = vor.u32 %v424, %v425
  %v427 = vshll.u32 2131351028, %v418
  %v428 = vshrl.u32 2102212464, %v419
  %v429 = vor.u32 %v427, %v428
  %v430 = vshll.u32 2102212464, %v418
  %v431 = vshrl.u32 920167782, %v419
  %v432 = vor.u32 %v430, %v431
  %v433 = vshll.u32 920167782, %v418
  %v434 = vshrl.u32 1326507024, %v419
  %v435 = vor.u32 %v433, %v434
  %vm436 = vcmp.lt.s32.totalorder %v417, 1
  %vm437 = vcmp.lt.s32.totalorder %v417, 2
  %vm438 = vcmp.lt.s32.totalorder %v417, 3
  %vm439 = vcmp.lt.s32.totalorder %v417, 4
  %v440 = vsel %vm436, %v420, %v423
  %v441 = vsel %vm439, %v429, 2102212464
  %v442 = vsel %vm438, %v426, %v441
  %v443 = vsel %vm437, %v440, %v442
  %v444 = vsel %vm436, %v423, %v426
  %v445 = vsel %vm439, %v432, 920167782
  %v446 = vsel %vm438, %v429, %v445
  %v447 = vsel %vm437, %v444, %v446
  %v448 = vsel %vm436, %v426, %v429
  %v449 = vsel %vm439, %v435, 1326507024
  %v450 = vsel %vm438, %v432, %v449
  %v451 = vsel %vm437, %v448, %v450
  %v452 = vshll.u32 %v412, 8
  %v453 = vmul.u32.u64.compose %v452, %v451
  %v454 = vextract.low.u32 %v453
  %v455 = vextract.high.u32 %v453
  %v456 = vmul.u32.u64.compose %v452, %v447
  %v457 = vextract.low.u32 %v456
  %v458 = vextract.high.u32 %v456
  %v459 = vmul.u32 %v452, %v443
  %v460 = vadd.s32 %v455, %v457
  %vm461 = vc.u32 %v455, %v457
  %v462 = vadd.s32 %v458, 1
  %v463 = vsel %vm461, %v462, %v458
  %v464 = vadd.s32 %v459, %v463
  %v465 = vadd.s32 %v464, 536870912
  %v466 = vshrl.u32 %v465, 30
  %v467 = vshll.u32 %v466, 30
  %v468 = vsub.s32 %v464, %v467
  %vm469 = vcmp.lt.s32.totalorder %v468, 0
  %v470 = vsub.s32 0, %v468
  %v471 = vsel %vm469, %v470, %v468
  %v472 = vclz %v471
  %v473 = vsub.s32 %v472, 2
  %vm474 = vcmp.gt.s32.totalorder 0, %v473
  %v475 = vsel %vm474, 0, %v473
  %v476 = vsub.s32 32, %v475
  %v477 = vshll.u32 %v468, %v475
  %v478 = vshrl.u32 %v460, %v476
  %v479 = vor.u32 %v477, %v478
  %v480 = vsub.s32 4294967266, %v475
  %v481 = vadd.s32 %v480, 127
  %v482 = vshll.u32 %v481, 23
  %v483 = vor.u32 4788187, %v482
  %v484 = vand.u32 2147483647, %v483
  %v486 = vcvt.s32.f32 %v479
  %v487 = vmul.f32 %v486, %v484
  %v488 = vxor.u32 %v487, 2147483648
  %v489 = vsel %vm406, %v488, %v487
  %v490 = vsub.s32 4, %v466
  %v491 = vsel %vm406, %v490, %v466
  %v492 = vsel %vm405, %v91, %v489
  %v493 = vsel %vm405, 0, %v491
  %v494 = vcosq.f32.pop %v492
  %v495 = vsinq.f32.pop %v492
  %vm496 = vweird.f32 %v91
  %v497 = vadd.s32 %v493, 3
  %v498 = vand.u32 %v497, 3
  %vm499 = vcmp.lt.s32.totalorder %v498, 2
  %vm500 = vcmp.eq.s32.totalorder %v498, 0
  %v501 = vxor.u32 %v495, 2147483648
  %v502 = vsel %vm500, %v494, %v501
  %vm503 = vcmp.eq.s32.totalorder %v498, 2
  %v504 = vxor.u32 %v494, 2147483648
  %v505 = vsel %vm503, %v504, %v495
  %v506 = vsel %vm499, %v502, %v505
  %v507 = vsel %vm496, nan, %v506
  %v508 = vmul.f32 %v195, 0.45
  %v509 = vmul.f32 %v299, 0.45
  %v510 = vmul.f32 %v403, 0.45
  %v511 = vmul.f32 %v507, 0.45
  %512 = vst [vmem:[%s2] sm:$0xff] %v508
  %vm513 = vcmask 130048
  %514 = vst.msk [vmem:[%s2 + $0x8] sm:$0xff] %vm513, %v509
  %515 = vst [vmem:[%s2 + $0x10] sm:$0xf] %v510
  %vm516 = vcmask 125952
  %517 = vst.msk [vmem:[%s2 + $0x18] sm:$0xf] %vm516, %v511
  // Predicated region
  $region10: #{conv_transpose_fused.1} parent=0 // pred_check
    _
  $region11: #{conv_transpose_fused.1} parent=0 // pred_check_branch
    %519 = sbr.rel (0) target = $region13
  $region12: #{conv_transpose_fused.1} parent=0 // pred_region
    _
  $region13: #{conv_transpose_fused.1} parent=0 // pred_fallthru
    _
  // Predicated region
  $region14: #{conv_transpose_fused.1} parent=0 // pred_check
    _
  $region15: #{conv_transpose_fused.1} parent=0 // pred_check_branch
    %521 = sbr.rel (0) target = $region17
  $region16: #{conv_transpose_fused.1} parent=0 // pred_region
    _
  $region17: #{conv_transpose_fused.1} parent=0 // pred_fallthru
    _

</llo_original>
